<compile_context>
chip_gen: v6e
topology: v6e:2x2x1
jax: 0.10.0
libtpu: 0.0.40
codegen_flags: <defaults>
</compile_context>

<pallas_src>
import jax
import jax.numpy as jnp
from jax import lax
from jax.experimental import pallas as pl
from jax.experimental.pallas import tpu as pltpu

EPS_COS = 1e-8    # torch.nn.functional.cosine_similarity eps
EPS_SCORE = 1e-8  # score_func additive eps


def _round_up(x, m):
    return ((x + m - 1) // m) * m


def _make_kernel(mxu_dtype):
    inv_eps = 1.0 / EPS_COS  # clamp for zero rows, matches max(norm, eps)

    def kernel(params_ref, w_ref, e_ref, o_ref):
        # SMEM scalars: fused affine constants (0.5/temp, (0.5 + eps)/temp).
        scale = params_ref[0]
        offset = params_ref[1]

        w = w_ref[...].astype(jnp.float32)   # (tc, Dp)
        e = e_ref[...].astype(jnp.float32)   # (tb, Dp)

        # Inverse row norms via rsqrt (EUP), clamped like F.cosine_similarity:
        # 1/max(||x||, eps) == min(rsqrt(||x||^2), 1/eps).  Zero-padded rows
        # get inv_norm = 1/eps and stay all-zero after scaling (no NaNs).
        w_inv = jnp.minimum(
            lax.rsqrt(jnp.sum(w * w, axis=-1, keepdims=True)), inv_eps)  # (tc, 1)
        e_inv = jnp.minimum(
            lax.rsqrt(jnp.sum(e * e, axis=-1, keepdims=True)), inv_eps)  # (tb, 1)

        # Pre-normalize rows so the MXU output is already the cosine.
        w_hat = (w * w_inv).astype(mxu_dtype)   # (tc, Dp)
        e_hat = (e * e_inv).astype(mxu_dtype)   # (tb, Dp)

        # Contract over the shared D axis -- no explicit transpose of w.
        cos = lax.dot_general(
            e_hat, w_hat,
            dimension_numbers=(((1,), (1,)), ((), ())),
            preferred_element_type=jnp.float32)          # (tb, tc)

        # score_func + /temp fused into one affine.
        o_ref[...] = (cos * scale + offset).astype(o_ref.dtype)

    return kernel


def classifier_forward(emb, weight, temp, *, block_b=256, block_c=256,
                       mxu_dtype=jnp.float32):
    """emb: (B, D), weight (anchors): (C, D) -> scores (B, C) float32."""
    B, D = emb.shape
    C, D2 = weight.shape
    assert D == D2
    assert block_b % 8 == 0 and block_c % 128 == 0

    # Hardware-friendly padded sizes (zero padding is exact for this op).
    tb = min(block_b, _round_up(B, 8))       # sublane-aligned batch tile
    tc = min(block_c, _round_up(C, 128))     # lane-dense class tile
    Bp = _round_up(B, tb)
    Cp = _round_up(C, tc)
    Dp = _round_up(D, 128)                   # full MXU contraction / lane width

    emb_f = emb.astype(jnp.float32)
    w_f = weight.astype(jnp.float32)
    emb_p = emb_f if (Bp == B and Dp == D) else jnp.pad(
        emb_f, ((0, Bp - B), (0, Dp - D)))
    w_p = w_f if (Cp == C and Dp == D) else jnp.pad(
        w_f, ((0, Cp - C), (0, Dp - D)))

    # Affine constants for the epilogue, passed as SMEM scalars so a new
    # `temp` does not force a recompile.
    temp_f = jnp.asarray(temp, jnp.float32)
    params = jnp.stack([0.5 / temp_f, (0.5 + EPS_SCORE) / temp_f]).astype(jnp.float32)

    grid = (Bp // tb, Cp // tc)

    flops = 2.0 * Bp * Cp * Dp + 3.0 * (Bp + Cp) * Dp
    bytes_accessed = 4.0 * (Bp * Dp + Cp * Dp + Bp * Cp)

    out = pl.pallas_call(
        _make_kernel(mxu_dtype),
        out_shape=jax.ShapeDtypeStruct((Bp, Cp), jnp.float32),
        grid_spec=pltpu.PrefetchScalarGridSpec(
            num_scalar_prefetch=1,
            grid=grid,
            in_specs=[
                pl.BlockSpec((tc, Dp), lambda i, j, params: (j, 0)),   # weights
                pl.BlockSpec((tb, Dp), lambda i, j, params: (i, 0)),   # emb
            ],
            out_specs=pl.BlockSpec((tb, tc), lambda i, j, params: (i, j)),
        ),
        compiler_params=pltpu.CompilerParams(
            dimension_semantics=("parallel", "parallel")),
        cost_estimate=pl.CostEstimate(
            flops=int(flops), transcendentals=int(Bp + Cp),
            bytes_accessed=int(bytes_accessed)),
    )(params, w_p, emb_p)

    if Bp == B and Cp == C:
        return out
    return out[:B, :C]


def classifier_reference(emb, weight, temp):
    """Pure-JAX reference mirroring the PyTorch module."""
    w = weight[None, :, :]        # (1, C, D)
    e = emb[:, None, :]           # (B, 1, D)
    dots = jnp.sum(w * e, axis=-1)
    wn = jnp.maximum(jnp.linalg.norm(w, axis=-1), EPS_COS)
    en = jnp.maximum(jnp.linalg.norm(e, axis=-1), EPS_COS)
    cos = dots / (wn * en)
    return ((1.0 + cos) / 2.0 + EPS_SCORE) / temp


if __name__ == "__main__":
    key = jax.random.PRNGKey(0)
    k_w, k_e = jax.random.split(key)

    # Small shapes matching the module's forward: B embeddings vs C anchors.
    B, C, D = 8, 16, 32
    temp = 0.5

    anchors = jax.random.normal(k_w, (C, D), dtype=jnp.float32)
    emb = jax.random.normal(k_e, (B, D), dtype=jnp.float32)

    out = classifier_forward(emb, anchors, temp)
    out = jax.block_until_ready(out)
    ref = classifier_reference(emb, anchors, temp)
    assert out.shape == (B, C)
    assert jnp.allclose(out, ref, atol=1e-5, rtol=1e-5), "mismatch vs reference (small)"

    # Second case: ragged sizes exercising padding + a multi-tile (2x3) grid.
    B2, C2, D2 = 24, 300, 72
    k_w2, k_e2 = jax.random.split(k_e)
    anchors2 = jax.random.normal(k_w2, (C2, D2), dtype=jnp.float32)
    emb2 = jax.random.normal(k_e2, (B2, D2), dtype=jnp.float32)

    out2 = jax.block_until_ready(
        classifier_forward(emb2, anchors2, temp, block_b=16, block_c=128))
    ref2 = classifier_reference(emb2, anchors2, temp)
    assert out2.shape == (B2, C2)
    assert jnp.allclose(out2, ref2, atol=1e-5, rtol=1e-5), "mismatch vs reference (tiled)"

    # Third case: fully aligned shapes hitting the no-pad fast path.
    B3, C3, D3 = 32, 256, 128
    k_w3, k_e3 = jax.random.split(k_e2)
    anchors3 = jax.random.normal(k_w3, (C3, D3), dtype=jnp.float32)
    emb3 = jax.random.normal(k_e3, (B3, D3), dtype=jnp.float32)

    out3 = jax.block_until_ready(classifier_forward(emb3, anchors3, temp))
    ref3 = classifier_reference(emb3, anchors3, temp)
    assert out3.shape == (B3, C3)
    assert jnp.allclose(out3, ref3, atol=1e-5, rtol=1e-5), "mismatch vs reference (aligned)"

    print("KERNEL_OK")
</pallas_src>

<mosaic_0001>
module attributes {stable_mosaic.version = 11 : i64} {
  func.func @kernel(%arg0: i32, %arg1: i32, %arg2: memref<2xf32, #tpu.memory_space<smem>>, %arg3: memref<128x128xf32, #tpu.memory_space<vmem>>, %arg4: memref<8x128xf32, #tpu.memory_space<vmem>>, %arg5: memref<8x128xf32, #tpu.memory_space<vmem>>) attributes {dimension_semantics = [#tpu.dimension_semantics<parallel>, #tpu.dimension_semantics<parallel>], iteration_bounds = array<i64: 1, 1>, scalar_prefetch = 1 : i64, scratch_operands = 0 : i64, tpu.core_type = #tpu.core_type<tc>, window_params = [{transform_indices = @transform_0, window_bounds = array<i64: 128, 128>}, {transform_indices = @transform_1, window_bounds = array<i64: 8, 128>}, {transform_indices = @transform_2, window_bounds = array<i64: 8, 128>}]} {
    %c0 = arith.constant 0 : index
    %0 = memref.load %arg2[%c0] : memref<2xf32, #tpu.memory_space<smem>>
    %c1 = arith.constant 1 : index
    %1 = memref.load %arg2[%c1] : memref<2xf32, #tpu.memory_space<smem>>
    %c0_0 = arith.constant 0 : index
    %c0_1 = arith.constant 0 : index
    %2 = vector.load %arg3[%c0_0, %c0_1] : memref<128x128xf32, #tpu.memory_space<vmem>>, vector<128x128xf32>
    %c0_2 = arith.constant 0 : index
    %c0_3 = arith.constant 0 : index
    %3 = vector.load %arg4[%c0_2, %c0_3] : memref<8x128xf32, #tpu.memory_space<vmem>>, vector<8x128xf32>
    %4 = arith.mulf %2, %2 : vector<128x128xf32>
    %cst = arith.constant dense<0.000000e+00> : vector<128xf32>
    %5 = vector.multi_reduction <add>, %4, %cst [1] : vector<128x128xf32> to vector<128xf32>
    %6 = vector.shape_cast %5 : vector<128xf32> to vector<128x1xf32>
    %7 = math.rsqrt %6 : vector<128x1xf32>
    %cst_4 = arith.constant 1.000000e+08 : f32
    %8 = vector.broadcast %cst_4 : f32 to vector<128x1xf32>
    %9 = arith.minimumf %7, %8 : vector<128x1xf32>
    %10 = arith.mulf %3, %3 : vector<8x128xf32>
    %cst_5 = arith.constant dense<0.000000e+00> : vector<8xf32>
    %11 = vector.multi_reduction <add>, %10, %cst_5 [1] : vector<8x128xf32> to vector<8xf32>
    %12 = vector.shape_cast %11 : vector<8xf32> to vector<8x1xf32>
    %13 = math.rsqrt %12 : vector<8x1xf32>
    %cst_6 = arith.constant 1.000000e+08 : f32
    %14 = vector.broadcast %cst_6 : f32 to vector<8x1xf32>
    %15 = arith.minimumf %13, %14 : vector<8x1xf32>
    %16 = vector.broadcast %9 : vector<128x1xf32> to vector<128x128xf32>
    %17 = arith.mulf %2, %16 : vector<128x128xf32>
    %18 = vector.broadcast %15 : vector<8x1xf32> to vector<8x128xf32>
    %19 = arith.mulf %3, %18 : vector<8x128xf32>
    %cst_7 = arith.constant dense<0.000000e+00> : vector<8x128xf32>
    %20 = tpu.matmul %19, %17, %cst_7 {dimension_numbers = #tpu.dot_dimension_numbers<[1], [1], [0], [0], [0, 0, 1, 0], [], []>} : vector<8x128xf32>, vector<128x128xf32>, vector<8x128xf32> -> vector<8x128xf32>
    %21 = vector.broadcast %0 : f32 to vector<8x128xf32>
    %22 = arith.mulf %20, %21 : vector<8x128xf32>
    %23 = vector.broadcast %1 : f32 to vector<8x128xf32>
    %24 = arith.addf %22, %23 : vector<8x128xf32>
    %c0_8 = arith.constant 0 : index
    %c0_9 = arith.constant 0 : index
    %25 = vector.load %arg5[%c0_8, %c0_9] : memref<8x128xf32, #tpu.memory_space<vmem>>, vector<8x128xf32>
    tpu.vector_store %arg5[%c0_8, %c0_9], %24 {strides = array<i32>} : memref<8x128xf32, #tpu.memory_space<vmem>>, vector<8x128xf32>,
    return
  }
  func.func @transform_0(%arg0: i32, %arg1: i32, %arg2: memref<2xf32, #tpu.memory_space<smem>>) -> (i32, i32) {
    %c0_i32 = arith.constant 0 : i32
    %c0_i32_0 = arith.constant 0 : i32
    return %arg1, %c0_i32 : i32, i32
  }
  func.func @transform_1(%arg0: i32, %arg1: i32, %arg2: memref<2xf32, #tpu.memory_space<smem>>) -> (i32, i32) {
    %c0_i32 = arith.constant 0 : i32
    %c0_i32_0 = arith.constant 0 : i32
    return %arg0, %c0_i32 : i32, i32
  }
  func.func @transform_2(%arg0: i32, %arg1: i32, %arg2: memref<2xf32, #tpu.memory_space<smem>>) -> (i32, i32) {
    %c0_i32 = arith.constant 0 : i32
    return %arg0, %arg1 : i32, i32
  }
}

</mosaic_0001>

<llo_original>
// kernel: tpu_custom_call.1
$region0: #{tpu_custom_call.1}
  #allocation0 [shape = 'u32[]', space=smem, size = 0x4, offset = 0x4, fixed_abs, tag = 'smem constant byte address 0x4 - core index']
  #allocation1 [shape = 'u32[144,128]{1,0:T(1,128)}', space=vmem, size = 0x12000, scoped, tag = 'internal scratch']
  #allocation2 [shape = 's32[1]{0}', space=sflag, size = 0x4, scoped, tag = 'scoped memory for tpu_custom_call.1']
  #allocation3 [shape = 'u8[512]{0}', space=smem, size = 0x200, scoped, tag = 'prefetched SMEM operand 0']
  %s0 = inlined_call_operand.hbm [shape: f32[2], index: 0, kind: input, shape index: {}]
  %s1 = inlined_call_operand.hbm [shape: f32[128,128], index: 1, kind: input, shape index: {}]
  %s2 = inlined_call_operand.hbm [shape: f32[8,128], index: 2, kind: input, shape index: {}]
  %s3 = inlined_call_operand.hbm [shape: f32[8,128], index: 3, kind: output, shape index: {}]
  %s4 = sld [smem:[#allocation0]]
  $region26: #{tpu_custom_call.1} parent=0
    _
  %s6 = ssub.s32 1, %s4
  %s7 = scalar_select 0, %s6, %s4
  %9 = dma.hbm_to_smem %s0, 16, [#allocation3], [#allocation2]
  %10 = dma.done [#allocation2], 16
  %11 = sfence
  $region1: #{tpu_custom_call.1} parent=0
    #allocation4 [shape = 'u8[65536]{0}', space=vmem, size = 0x10000, scoped, tag = 'input window, operand 1, single buffered']
    #allocation5 [shape = 's32[1]{0}', space=sflag, size = 0x4, scoped, tag = 'scoped memory for tpu_custom_call.1']
    #allocation6 [shape = 's32[1]{0}', space=sflag, size = 0x4, scoped, tag = 'scoped memory for tpu_custom_call.1']
    #allocation7 [shape = 'u8[4096]{0}', space=vmem, size = 0x1000, scoped, tag = 'input window, operand 2, single buffered']
    #allocation8 [shape = 's32[1]{0}', space=sflag, size = 0x4, scoped, tag = 'scoped memory for tpu_custom_call.1']
    #allocation9 [shape = 'u8[4096]{0}', space=vmem, size = 0x1000, scoped, tag = 'output window, operand 0, single buffered']
    %12 = vsyncpa [#allocation5], 0
    %13 = vsyncpa [#allocation8], 0
    %14 = vsyncpa [#allocation6], 0
    // Predicated region
    $region2: #{tpu_custom_call.1} parent=1 // pred_check
      _
    $region3: #{tpu_custom_call.1} parent=1 // pred_check_branch
      %16 = sbr.rel (0) target = $region5
    $region4: #{tpu_custom_call.1} parent=1 // pred_region
      %s18 = ssub.s32 2048, 2048
      %19 = vsyncadd [#allocation5], %s18
      %s20 = sshll.u32 [#allocation4], 4
      %s21 = int_to_ptr.vmem [resolvable:$true] %s20
      %26 = dma.hbm_to_vmem [thread:$0]  %s1, 2048, %s21, [#allocation5], 128, 128, 8
    $region5: #{tpu_custom_call.1} parent=1 // pred_fallthru
      _
    // Predicated region
    $region6: #{tpu_custom_call.1} parent=1 // pred_check
      _
    $region7: #{tpu_custom_call.1} parent=1 // pred_check_branch
      %28 = sbr.rel (0) target = $region9
    $region8: #{tpu_custom_call.1} parent=1 // pred_region
      %s30 = ssub.s32 128, 128
      %31 = vsyncadd [#allocation8], %s30
      %s33 = sshll.u32 [#allocation7], 4
      %s34 = int_to_ptr.vmem [resolvable:$true] %s33
      %36 = dma.hbm_to_vmem [thread:$0]  %s2, 128, %s34, [#allocation8]
    $region9: #{tpu_custom_call.1} parent=1 // pred_fallthru
      _
    // Predicated region
    $region10: #{tpu_custom_call.1} parent=1 // pred_check
      _
    $region11: #{tpu_custom_call.1} parent=1 // pred_check_branch
      %38 = sbr.rel (0) target = $region13
    $region12: #{tpu_custom_call.1} parent=1 // pred_region
      %39 = dma.done [#allocation5], 2048
    $region13: #{tpu_custom_call.1} parent=1 // pred_fallthru
      _
    // Predicated region
    $region14: #{tpu_custom_call.1} parent=1 // pred_check
      _
    $region15: #{tpu_custom_call.1} parent=1 // pred_check_branch
      %41 = sbr.rel (0) target = $region17
    $region16: #{tpu_custom_call.1} parent=1 // pred_region
      %42 = dma.done [#allocation8], 128
    $region17: #{tpu_custom_call.1} parent=1 // pred_fallthru
      _
    %s43 = sld [smem:[#allocation3]]
    %s44 = sld [smem:[#allocation3 + $0x1]]
    %v45 = vld [vmem:[#allocation4] sm:$0xff]
    %v46 = vld [vmem:[#allocation4 + $0x8] sm:$0xff]
    %v47 = vld [vmem:[#allocation4 + $0x10] sm:$0xff]
    %v48 = vld [vmem:[#allocation4 + $0x18] sm:$0xff]
    %v49 = vld [vmem:[#allocation4 + $0x20] sm:$0xff]
    %v50 = vld [vmem:[#allocation4 + $0x28] sm:$0xff]
    %v51 = vld [vmem:[#allocation4 + $0x30] sm:$0xff]
    %v52 = vld [vmem:[#allocation4 + $0x38] sm:$0xff]
    %v53 = vld [vmem:[#allocation4 + $0x40] sm:$0xff]
    %v54 = vld [vmem:[#allocation4 + $0x48] sm:$0xff]
    %v55 = vld [vmem:[#allocation4 + $0x50] sm:$0xff]
    %v56 = vld [vmem:[#allocation4 + $0x58] sm:$0xff]
    %v57 = vld [vmem:[#allocation4 + $0x60] sm:$0xff]
    %v58 = vld [vmem:[#allocation4 + $0x68] sm:$0xff]
    %v59 = vld [vmem:[#allocation4 + $0x70] sm:$0xff]
    %v60 = vld [vmem:[#allocation4 + $0x78] sm:$0xff]
    %v61 = vld [vmem:[#allocation7] sm:$0xff]
    %v62 = vmul.f32 %v45, %v45
    %v63 = vmul.f32 %v46, %v46
    %v64 = vmul.f32 %v47, %v47
    %v65 = vmul.f32 %v48, %v48
    %v66 = vmul.f32 %v49, %v49
    %v67 = vmul.f32 %v50, %v50
    %v68 = vmul.f32 %v51, %v51
    %v69 = vmul.f32 %v52, %v52
    %v70 = vmul.f32 %v53, %v53
    %v71 = vmul.f32 %v54, %v54
    %v72 = vmul.f32 %v55, %v55
    %v73 = vmul.f32 %v56, %v56
    %v74 = vmul.f32 %v57, %v57
    %v75 = vmul.f32 %v58, %v58
    %v76 = vmul.f32 %v59, %v59
    %v77 = vmul.f32 %v60, %v60
    %78 = vadd.xlane.f32.xlu0 %v62
    %v79 = vpop.xlane.xlu0 %78
    %80 = vadd.xlane.f32.xlu0 %v63
    %v81 = vpop.xlane.xlu0 %80
    %82 = vadd.xlane.f32.xlu0 %v64
    %v83 = vpop.xlane.xlu0 %82
    %84 = vadd.xlane.f32.xlu0 %v65
    %v85 = vpop.xlane.xlu0 %84
    %86 = vadd.xlane.f32.xlu0 %v66
    %v87 = vpop.xlane.xlu0 %86
    %88 = vadd.xlane.f32.xlu0 %v67
    %v89 = vpop.xlane.xlu0 %88
    %90 = vadd.xlane.f32.xlu0 %v68
    %v91 = vpop.xlane.xlu0 %90
    %92 = vadd.xlane.f32.xlu0 %v69
    %v93 = vpop.xlane.xlu0 %92
    %94 = vadd.xlane.f32.xlu0 %v70
    %v95 = vpop.xlane.xlu0 %94
    %96 = vadd.xlane.f32.xlu0 %v71
    %v97 = vpop.xlane.xlu0 %96
    %98 = vadd.xlane.f32.xlu0 %v72
    %v99 = vpop.xlane.xlu0 %98
    %100 = vadd.xlane.f32.xlu0 %v73
    %v101 = vpop.xlane.xlu0 %100
    %102 = vadd.xlane.f32.xlu0 %v74
    %v103 = vpop.xlane.xlu0 %102
    %104 = vadd.xlane.f32.xlu0 %v75
    %v105 = vpop.xlane.xlu0 %104
    %106 = vadd.xlane.f32.xlu0 %v76
    %v107 = vpop.xlane.xlu0 %106
    %108 = vadd.xlane.f32.xlu0 %v77
    %v109 = vpop.xlane.xlu0 %108
    %v110 = vrsqrt.pop %v79
    %v111 = vrsqrt.pop %v81
    %v112 = vrsqrt.pop %v83
    %v113 = vrsqrt.pop %v85
    %v114 = vrsqrt.pop %v87
    %v115 = vrsqrt.pop %v89
    %v116 = vrsqrt.pop %v91
    %v117 = vrsqrt.pop %v93
    %v118 = vrsqrt.pop %v95
    %v119 = vrsqrt.pop %v97
    %v120 = vrsqrt.pop %v99
    %v121 = vrsqrt.pop %v101
    %v122 = vrsqrt.pop %v103
    %v123 = vrsqrt.pop %v105
    %v124 = vrsqrt.pop %v107
    %v125 = vrsqrt.pop %v109
    %v126 = vmin.f32 %v110, 1e+08
    %v127 = vmin.f32 %v111, 1e+08
    %v128 = vmin.f32 %v112, 1e+08
    %v129 = vmin.f32 %v113, 1e+08
    %v130 = vmin.f32 %v114, 1e+08
    %v131 = vmin.f32 %v115, 1e+08
    %v132 = vmin.f32 %v116, 1e+08
    %v133 = vmin.f32 %v117, 1e+08
    %v134 = vmin.f32 %v118, 1e+08
    %v135 = vmin.f32 %v119, 1e+08
    %v136 = vmin.f32 %v120, 1e+08
    %v137 = vmin.f32 %v121, 1e+08
    %v138 = vmin.f32 %v122, 1e+08
    %v139 = vmin.f32 %v123, 1e+08
    %v140 = vmin.f32 %v124, 1e+08
    %v141 = vmin.f32 %v125, 1e+08
    %v142 = vmul.f32 %v61, %v61
    %143 = vadd.xlane.f32.xlu0 %v142
    %v144 = vpop.xlane.xlu0 %143
    %v145 = vrsqrt.pop %v144
    %v146 = vmin.f32 %v145, 1e+08
    %v147 = vmul.f32 %v45, %v126
    %v148 = vmul.f32 %v46, %v127
    %v149 = vmul.f32 %v47, %v128
    %v150 = vmul.f32 %v48, %v129
    %v151 = vmul.f32 %v49, %v130
    %v152 = vmul.f32 %v50, %v131
    %v153 = vmul.f32 %v51, %v132
    %v154 = vmul.f32 %v52, %v133
    %v155 = vmul.f32 %v53, %v134
    %v156 = vmul.f32 %v54, %v135
    %v157 = vmul.f32 %v55, %v136
    %v158 = vmul.f32 %v56, %v137
    %v159 = vmul.f32 %v57, %v138
    %v160 = vmul.f32 %v58, %v139
    %v161 = vmul.f32 %v59, %v140
    %v162 = vmul.f32 %v60, %v141
    %v163 = vmul.f32 %v61, %v146
    %164 = vmatprep.subr.mxu0 0.0
    %165 = vmatpush1.xpose.msra.mxu0 %v162
    %166 = vmatprep.subr.mxu0 0.0
    %167 = vmatpush1.xpose.msra.mxu0 %v161
    %168 = vmatprep.subr.mxu0 0.0
    %169 = vmatpush1.xpose.msra.mxu0 %v160
    %170 = vmatprep.subr.mxu0 0.0
    %171 = vmatpush1.xpose.msra.mxu0 %v159
    %172 = vmatprep.subr.mxu0 0.0
    %173 = vmatpush1.xpose.msra.mxu0 %v158
    %174 = vmatprep.subr.mxu0 0.0
    %175 = vmatpush1.xpose.msra.mxu0 %v157
    %176 = vmatprep.subr.mxu0 0.0
    %177 = vmatpush1.xpose.msra.mxu0 %v156
    %178 = vmatprep.subr.mxu0 0.0
    %179 = vmatpush1.xpose.msra.mxu0 %v155
    %180 = vmatprep.subr.mxu0 0.0
    %181 = vmatpush1.xpose.msra.mxu0 %v154
    %182 = vmatprep.subr.mxu0 0.0
    %183 = vmatpush1.xpose.msra.mxu0 %v153
    %184 = vmatprep.subr.mxu0 0.0
    %185 = vmatpush1.xpose.msra.mxu0 %v152
    %186 = vmatprep.subr.mxu0 0.0
    %187 = vmatpush1.xpose.msra.mxu0 %v151
    %188 = vmatprep.subr.mxu0 0.0
    %189 = vmatpush1.xpose.msra.mxu0 %v150
    %190 = vmatprep.subr.mxu0 0.0
    %191 = vmatpush1.xpose.msra.mxu0 %v149
    %192 = vmatprep.subr.mxu0 0.0
    %193 = vmatpush1.xpose.msra.mxu0 %v148
    %194 = vmatprep.subr.mxu0 0.0
    %195 = vmatpush1.xpose.msra.mxu0 %v147
    %196 = vmatprep.subr.mxu0 0.0
    %197 = vmatpush2.xpose.msra.mxu0 0.0
    %198 = vmatprep.subr.mxu0 0.0
    %199 = vmatpush2.xpose.msra.mxu0 0.0
    %200 = vmatprep.subr.mxu0 0.0
    %201 = vmatpush2.xpose.msra.mxu0 0.0
    %202 = vmatprep.subr.mxu0 0.0
    %203 = vmatpush2.xpose.msra.mxu0 0.0
    %204 = vmatprep.subr.mxu0 0.0
    %205 = vmatpush2.xpose.msra.mxu0 0.0
    %206 = vmatprep.subr.mxu0 0.0
    %207 = vmatpush2.xpose.msra.mxu0 0.0
    %208 = vmatprep.subr.mxu0 0.0
    %209 = vmatpush2.xpose.msra.mxu0 0.0
    %210 = vmatprep.subr.mxu0 0.0
    %211 = vmatpush2.xpose.msra.mxu0 0.0
    %212 = vmatprep.subr.mxu0 0.0
    %213 = vmatpush2.xpose.msra.mxu0 0.0
    %214 = vmatprep.subr.mxu0 0.0
    %215 = vmatpush2.xpose.msra.mxu0 0.0
    %216 = vmatprep.subr.mxu0 0.0
    %217 = vmatpush2.xpose.msra.mxu0 0.0
    %218 = vmatprep.subr.mxu0 0.0
    %219 = vmatpush2.xpose.msra.mxu0 0.0
    %220 = vmatprep.subr.mxu0 0.0
    %221 = vmatpush2.xpose.msra.mxu0 0.0
    %222 = vmatprep.subr.mxu0 0.0
    %223 = vmatpush2.xpose.msra.mxu0 0.0
    %224 = vmatprep.subr.mxu0 0.0
    %225 = vmatpush2.xpose.msra.mxu0 0.0
    %226 = vmatprep.subr.mxu0 0.0
    %227 = vmatpush2.xpose.msra.mxu0 0.0
    %228 = vmatprep.mubr.f32.mxu0 0.0
    %229 = vmatmul.mubr.f32.gmra.mxu0 %v163
    %v230 = vpop.f32.mrf.mxu0
    %v231 = vadd.f32 0.0, %v230
    %v232 = vpop.f32.mrf.mxu0
    %233 = vdwg.mxu0
    %v234 = vstv %s43
    %v235 = vmul.f32 %v231, %v234
    %v236 = vstv %s44
    %v237 = vadd.f32 %v235, %v236
    %238 = vst [vmem:[#allocation9] sm:$0xff] %v237
    // Predicated region
    $region18: #{tpu_custom_call.1} parent=1 // pred_check
      _
    $region19: #{tpu_custom_call.1} parent=1 // pred_check_branch
      %240 = sbr.rel (0) target = $region21
    $region20: #{tpu_custom_call.1} parent=1 // pred_region
      %s242 = ssub.s32 128, 128
      %243 = vsyncadd [#allocation6], %s242
      %s245 = sshll.u32 [#allocation9], 4
      %s246 = int_to_ptr.vmem [resolvable:$true] %s245
      %248 = dma.vmem_to_hbm [thread:$0]  %s246, 128, %s3, [#allocation6]
    $region21: #{tpu_custom_call.1} parent=1 // pred_fallthru
      _
    // Predicated region
    $region22: #{tpu_custom_call.1} parent=1 // pred_check
      _
    $region23: #{tpu_custom_call.1} parent=1 // pred_check_branch
      %250 = sbr.rel (0) target = $region25
    $region24: #{tpu_custom_call.1} parent=1 // pred_region
      %251 = dma.done [#allocation6], 128
    $region25: #{tpu_custom_call.1} parent=1 // pred_fallthru
      _
    %252 = vsyncpa [#allocation5], 1
    %253 = vsyncpa [#allocation8], 1
    %254 = vsyncpa [#allocation6], 1

</llo_original>
